<compile_context>
chip_gen: v7x
topology: tpu7x:2x2x1
jax: 0.10.0
libtpu: 0.0.40
codegen_flags: <defaults>
</compile_context>

<pallas_src>
import functools

import jax
import jax.numpy as jnp
from jax.experimental import pallas as pl
from jax.experimental.pallas import tpu as pltpu


def _round_up(x, m):
    return ((x + m - 1) // m) * m


def _vmem_budget_bytes():
    """~60% of this chip's VMEM capacity (fallback: 64 MiB if unqueryable)."""
    cap = 64 * 1024 * 1024
    try:
        cap = int(getattr(pltpu.get_tpu_info(), "vmem_capacity_bytes", cap))
    except Exception:  # stay conservative if the query is unavailable
        pass
    return int(cap * 0.6)


def _pick_tm(tm_req, n_rows, k, out_pad, in_bytes, out_bytes, budget, granule):
    """Largest row tile (multiple of `granule`) fitting the VMEM budget.

    Accounts for the double-buffered pipeline: LHS tile + output tile per
    step, plus the grid-invariant weight/bias blocks (their second buffer is
    dead VMEM but tiny relative to the LHS tile, so we just budget it).
    """
    k_vmem = _round_up(max(k, 1), 128)              # lane-padded VMEM footprint
    fixed = 2 * k_vmem * out_pad * in_bytes + 2 * 8 * out_pad * 4
    per_row = 2 * k_vmem * in_bytes + 2 * out_pad * max(out_bytes, 4)
    avail = max(budget - fixed, granule * per_row)
    tm = min(tm_req, avail // per_row)
    # Keep >= 2 grid steps when the problem allows it: v7x has 2 TensorCores
    # and a 1-step grid would leave one idle under "parallel" semantics.
    if n_rows > granule:
        tm = min(tm, _round_up(-(-n_rows // 2), granule))
    tm = min(tm, _round_up(n_rows, granule))
    return int(max(granule, (tm // granule) * granule))


def _spiralconv_kernel(spirals_ref, w_ref, b_ref, o_ref, *, activation):
    """One row tile: (tm, K) @ (K, out_pad) + bias, then activation."""
    y = jnp.dot(spirals_ref[...], w_ref[...],
                preferred_element_type=jnp.float32)
    y = y + b_ref[...]                        # (1, out_pad) broadcasts over rows

    if activation == 'relu':
        y = jnp.maximum(y, 0.0)
    elif activation == 'elu':
        # ELU(alpha=1); clamp the exp argument so the dead branch never infs.
        y = jnp.where(y > 0, y, jnp.exp(jnp.minimum(y, 0.0)) - 1.0)
    elif activation == 'leaky_relu':
        y = jnp.where(y > 0, y, 0.02 * y)     # module uses nn.LeakyReLU(0.02)
    elif activation == 'sigmoid':
        y = jax.nn.sigmoid(y)
    elif activation == 'tanh':
        y = jnp.tanh(y)
    elif activation == 'identity':
        pass
    else:
        raise NotImplementedError(activation)

    o_ref[...] = y.astype(o_ref.dtype)


def spiral_conv(x, spiral_adj, weight, bias, *, activation='elu', tm=2048,
                compute_dtype=jnp.bfloat16, out_dtype=jnp.float32):
    """Pallas implementation of SpiralConv.forward.

    x:          (bsize, num_pts, feats)        float32
    spiral_adj: (bsize, num_pts, spiral_size)  int32 vertex indices
    weight:     (out_c, spiral_size * feats)   float32 (PyTorch Linear layout)
    bias:       (out_c,)                       float32
    compute_dtype: jnp.bfloat16 (default, half the LHS HBM stream + full-rate
                   MXU on v6e/v7x; f32 accumulation) or jnp.float32.
    out_dtype:  output dtype (float32 to match the module; bf16 available for
                downstream mem-bound consumers).
    returns:    (bsize, num_pts, out_c)        out_dtype
    """
    bsize, num_pts, feats = x.shape
    _, _, spiral_size = spiral_adj.shape
    K = spiral_size * feats
    out_c = weight.shape[0]
    N = bsize * num_pts

    out_pad = _round_up(out_c, 128)          # lane-dense, unmasked vst
    in_bytes = jnp.dtype(compute_dtype).itemsize
    out_bytes = jnp.dtype(out_dtype).itemsize
    granule = 32 if in_bytes < 4 else 8      # bf16 native tile is (16, 128)

    vmem_budget = _vmem_budget_bytes()
    tm_eff = _pick_tm(tm, N, K, out_pad, in_bytes, out_bytes,
                      vmem_budget, granule)
    grid = (pl.cdiv(N, tm_eff),)

    # --- gather glue (pure indexing, plain JAX; see TODO at top) ------------
    # spirals[b*num_pts + p, s*feats:(s+1)*feats] = x[b, spiral_adj[b, p, s], :]
    # The bf16 convert fuses with the gather, so the materialized LHS is
    # half-size and there is no separate pad pass anymore.
    idx = spiral_adj.reshape(bsize, num_pts * spiral_size, 1)
    gathered = jnp.take_along_axis(x, idx, axis=1)            # (b, n*s, feats)
    spirals = gathered.reshape(N, K).astype(compute_dtype)    # (N, K), no pad

    w_t = jnp.pad(weight.T.astype(compute_dtype),
                  ((0, 0), (0, out_pad - out_c)))              # (K, out_pad)
    b_row = jnp.pad(bias.astype(jnp.float32),
                    (0, out_pad - out_c)).reshape(1, out_pad)

    kernel = functools.partial(_spiralconv_kernel, activation=activation)

    transcendental_acts = ('elu', 'sigmoid', 'tanh')
    cost = pl.CostEstimate(
        flops=2 * N * K * out_pad,
        transcendentals=N * out_pad if activation in transcendental_acts else 0,
        bytes_accessed=(N * K * in_bytes            # LHS stream
                        + K * out_pad * in_bytes    # weight (read once)
                        + out_pad * 4               # bias
                        + N * out_pad * out_bytes)) # output writeback

    out_flat = pl.pallas_call(
        kernel,
        out_shape=jax.ShapeDtypeStruct((N, out_pad), out_dtype),
        grid_spec=pltpu.PrefetchScalarGridSpec(
            num_scalar_prefetch=0,
            grid=grid,
            in_specs=[
                # Full-K block (allowed even when K % 128 != 0); ragged last
                # row tile is masked by Pallas, garbage rows are never stored.
                pl.BlockSpec((tm_eff, K), lambda i: (i, 0)),      # spirals
                # Grid-invariant blocks: the pipeline does not re-DMA them.
                pl.BlockSpec((K, out_pad), lambda i: (0, 0)),     # weight^T
                pl.BlockSpec((1, out_pad), lambda i: (0, 0)),     # bias
            ],
            out_specs=pl.BlockSpec((tm_eff, out_pad), lambda i: (i, 0)),
        ),
        compiler_params=pltpu.CompilerParams(
            dimension_semantics=("parallel",),
            vmem_limit_bytes=int(vmem_budget)),
        cost_estimate=cost,
    )(spirals, w_t, b_row)

    out = out_flat[:, :out_c].reshape(bsize, num_pts, out_c)
    # zero_padding: zero the last vertex of every batch element (tiny
    # O(bsize*out_c) update in the wrapper; no in-kernel mask stream needed).
    out = out.at[:, -1, :].set(0.0)
    return out


def spiral_conv_ref(x, spiral_adj, weight, bias, activation='elu'):
    """Pure-JAX reference mirroring the PyTorch forward exactly."""
    bsize, num_pts, feats = x.shape
    _, _, spiral_size = spiral_adj.shape
    idx = spiral_adj.reshape(bsize, num_pts * spiral_size, 1)
    spirals = jnp.take_along_axis(x, idx, axis=1).reshape(
        bsize * num_pts, spiral_size * feats)
    y = spirals @ weight.T + bias
    assert activation == 'elu'
    y = jnp.where(y > 0, y, jnp.exp(y) - 1.0)
    y = y.reshape(bsize, num_pts, -1)
    pad = jnp.ones((1, num_pts, 1), jnp.float32).at[0, -1, 0].set(0.0)
    return y * pad


if __name__ == "__main__":
    # Small shapes consistent with the module: B x num_pts x feats mesh tensor.
    bsize, num_pts, feats = 2, 16, 4
    spiral_size, out_c = 8, 32
    K = spiral_size * feats

    key = jax.random.PRNGKey(0)
    kx, kadj, kw, kb = jax.random.split(key, 4)

    x = jax.random.normal(kx, (bsize, num_pts, feats), dtype=jnp.float32)
    spiral_adj = jax.random.randint(kadj, (bsize, num_pts, spiral_size),
                                    0, num_pts, dtype=jnp.int32)

    # Deterministic Linear(K, out_c) init (PyTorch-style uniform bound).
    bound = 1.0 / (K ** 0.5)
    weight = jax.random.uniform(kw, (out_c, K), jnp.float32, -bound, bound)
    bias = jax.random.uniform(kb, (out_c,), jnp.float32, -bound, bound)

    ref = spiral_conv_ref(x, spiral_adj, weight, bias, activation='elu')

    # f32 path — must match the reference tightly.
    out_f32 = jax.block_until_ready(
        spiral_conv(x, spiral_adj, weight, bias, activation='elu',
                    compute_dtype=jnp.float32))
    assert out_f32.shape == (bsize, num_pts, out_c)
    assert jnp.allclose(out_f32, ref, atol=1e-5, rtol=1e-5)

    # Default bf16-input / f32-accumulate path (perf path) — sanity check.
    out_bf16 = jax.block_until_ready(
        spiral_conv(x, spiral_adj, weight, bias, activation='elu'))
    assert out_bf16.shape == (bsize, num_pts, out_c)
    assert float(jnp.max(jnp.abs(out_bf16 - ref))) < 0.1

    print("KERNEL_OK")
</pallas_src>

<mosaic_0001>
module attributes {stable_mosaic.version = 11 : i64} {
  func.func @_spiralconv_kernel(%arg0: i32, %arg1: memref<16x32xf32, #tpu.memory_space<vmem>>, %arg2: memref<32x128xf32, #tpu.memory_space<vmem>>, %arg3: memref<1x128xf32, #tpu.memory_space<vmem>>, %arg4: memref<16x128xf32, #tpu.memory_space<vmem>>) attributes {dimension_semantics = [#tpu.dimension_semantics<parallel>], iteration_bounds = array<i64: 2>, scalar_prefetch = 0 : i64, scratch_operands = 0 : i64, tpu.core_type = #tpu.core_type<tc>, window_params = [{transform_indices = @transform_0, window_bounds = array<i64: 16, 32>}, {pipeline_mode = #tpu.pipeline_mode<synchronous>, transform_indices = @transform_1, window_bounds = array<i64: 32, 128>}, {pipeline_mode = #tpu.pipeline_mode<synchronous>, transform_indices = @transform_2, window_bounds = array<i64: 1, 128>}, {transform_indices = @transform_3, window_bounds = array<i64: 16, 128>}]} {
    %c0 = arith.constant 0 : index
    %c0_0 = arith.constant 0 : index
    %0 = vector.load %arg1[%c0, %c0_0] : memref<16x32xf32, #tpu.memory_space<vmem>>, vector<16x32xf32>
    %c0_1 = arith.constant 0 : index
    %c0_2 = arith.constant 0 : index
    %1 = vector.load %arg2[%c0_1, %c0_2] : memref<32x128xf32, #tpu.memory_space<vmem>>, vector<32x128xf32>
    %cst = arith.constant dense<0.000000e+00> : vector<16x128xf32>
    %2 = tpu.matmul %0, %1, %cst {dimension_numbers = #tpu.dot_dimension_numbers<[1], [0], [0], [1], [0, 0, 1, 1], [], []>} : vector<16x32xf32>, vector<32x128xf32>, vector<16x128xf32> -> vector<16x128xf32>
    %c0_3 = arith.constant 0 : index
    %c0_4 = arith.constant 0 : index
    %3 = vector.load %arg3[%c0_3, %c0_4] : memref<1x128xf32, #tpu.memory_space<vmem>>, vector<1x128xf32>
    %4 = vector.broadcast %3 : vector<1x128xf32> to vector<16x128xf32>
    %5 = arith.addf %2, %4 : vector<16x128xf32>
    %cst_5 = arith.constant 0.000000e+00 : f32
    %6 = vector.broadcast %cst_5 : f32 to vector<16x128xf32>
    %7 = arith.cmpf ogt, %5, %6 : vector<16x128xf32>
    %cst_6 = arith.constant 0.000000e+00 : f32
    %8 = vector.broadcast %cst_6 : f32 to vector<16x128xf32>
    %9 = arith.minimumf %5, %8 : vector<16x128xf32>
    %10 = math.exp %9 : vector<16x128xf32>
    %cst_7 = arith.constant 1.000000e+00 : f32
    %11 = vector.broadcast %cst_7 : f32 to vector<16x128xf32>
    %12 = arith.subf %10, %11 : vector<16x128xf32>
    %13 = arith.select %7, %5, %12 : vector<16x128xi1>, vector<16x128xf32>
    %c0_8 = arith.constant 0 : index
    %c0_9 = arith.constant 0 : index
    %14 = vector.load %arg4[%c0_8, %c0_9] : memref<16x128xf32, #tpu.memory_space<vmem>>, vector<16x128xf32>
    tpu.vector_store %arg4[%c0_8, %c0_9], %13 {strides = array<i32>} : memref<16x128xf32, #tpu.memory_space<vmem>>, vector<16x128xf32>,
    return
  }
  func.func @transform_0(%arg0: i32) -> (i32, i32) {
    %c0_i32 = arith.constant 0 : i32
    %c0_i32_0 = arith.constant 0 : i32
    return %arg0, %c0_i32 : i32, i32
  }
  func.func @transform_1(%arg0: i32) -> (i32, i32) {
    %c0_i32 = arith.constant 0 : i32
    %c0_i32_0 = arith.constant 0 : i32
    %c0_i32_1 = arith.constant 0 : i32
    return %c0_i32, %c0_i32_0 : i32, i32
  }
  func.func @transform_2(%arg0: i32) -> (i32, i32) {
    %c0_i32 = arith.constant 0 : i32
    %c0_i32_0 = arith.constant 0 : i32
    %c0_i32_1 = arith.constant 0 : i32
    return %c0_i32, %c0_i32_0 : i32, i32
  }
  func.func @transform_3(%arg0: i32) -> (i32, i32) {
    %c0_i32 = arith.constant 0 : i32
    %c0_i32_0 = arith.constant 0 : i32
    return %arg0, %c0_i32 : i32, i32
  }
}

</mosaic_0001>

<llo_original>
// kernel: tpu_custom_call.1
$region0: #{tpu_custom_call.1}
  #allocation0 [shape = 'u32[]', space=smem, size = 0x4, offset = 0x4, fixed_abs, tag = 'smem constant byte address 0x4 - core index']
  #allocation1 [shape = 'u32[144,128]{1,0:T(1,128)}', space=vmem, size = 0x12000, scoped, tag = 'internal scratch']
  %s0 = inlined_call_operand.hbm [shape: f32[32,32], index: 0, kind: input, shape index: {}]
  %s1 = inlined_call_operand.hbm [shape: f32[32,128], index: 1, kind: input, shape index: {}]
  %s2 = inlined_call_operand.vmem [shape: f32[1,128], index: 2, kind: input, shape index: {}]
  %s3 = inlined_call_operand.hbm [shape: f32[32,128], index: 3, kind: output, shape index: {}]
  %s4 = sld [smem:[#allocation0]]
  $region53: #{tpu_custom_call.1} parent=0
    _
  %s6 = ssub.s32 1, %s4
  %s7 = scalar_select 0, %s6, %s4
  $region1: #{tpu_custom_call.1} parent=0
    #allocation2 [shape = 'u8[16384]{0}', space=vmem, size = 0x4000, scoped, tag = 'input window, operand 0']
    #allocation3 [shape = 's32[2]{0}', space=sflag, size = 0x8, scoped, tag = 'scoped memory for tpu_custom_call.1']
    #allocation4 [shape = 's32[2]{0}', space=sflag, size = 0x8, scoped, tag = 'scoped memory for tpu_custom_call.1']
    #allocation5 [shape = 'u8[16384]{0}', space=vmem, size = 0x4000, scoped, tag = 'input window, operand 1, single buffered']
    #allocation6 [shape = 's32[1]{0}', space=sflag, size = 0x4, scoped, tag = 'scoped memory for tpu_custom_call.1']
    #allocation7 [shape = 'u8[16384]{0}', space=vmem, size = 0x4000, scoped, tag = 'output window, operand 0']
    %8 = vsyncpa [#allocation3], 0
    %s9 = scalar_lea.sflag [#allocation3], 1
    %10 = vsyncpa %s9, 0
    %11 = vsyncpa [#allocation6], 0
    %12 = vsyncpa [#allocation4], 0
    %s13 = scalar_lea.sflag [#allocation4], 1
    %14 = vsyncpa %s13, 0
    loop: start=0, step=1, limit=4
    $region2: #{tpu_custom_call.1} parent=1 // loop_pre_header
      _
    $region3: #{tpu_custom_call.1} parent=1 // loop_header
      %s16 = sphi 0, %s20
      %p17 = scmp.ge.s32.totalorder %s16, 4
      %s26 = sphi 0, %s28
      %s29 = sphi 0, %s26
      %s30 = sphi 0, %s29
      %s46 = sphi 0, %s30
      %s50 = sphi 0, %s50
      %s52 = sphi 0, %s50
      %s53 = sphi 0, %s52
      %s67 = sphi 0, %s53
      %s71 = sphi 0, %s71
      %s73 = sphi 0, %s71
      %s74 = sphi 0, %s73
      %s88 = sphi 0, %s74
      %s94 = sphi 0, %s96
      %s97 = sphi 0, %s94
      %s98 = sphi 0, %s97
      %s114 = sphi 0, %s98
    $region4: #{tpu_custom_call.1} parent=1 // loop_header_branch
      %19 = sbr.rel (%p17) target = $region8
    $region5: #{tpu_custom_call.1} parent=1 // loop_body
      %s21 = ssub.s32 %s16, 1
      %s22 = ssub.s32 %s16, 2
      %s23 = sadd.s32 %s16, 1
      %s24 = ssub.s32 %s16, %s23
      %p25 = scmp.eq.s32.totalorder %s24, 0
      %s27 = sadd.s32 %s26, 1
      %s28 = scalar_select %p25, %s26, %s27
      %p31 = pneg %p25
      %p32 = scmp.eq.s32.totalorder %s16, 1
      %p33 = por %p31, %p32
      %p34 = scmp.ne.s32.totalorder %s26, %s29
      %p35 = scmp.eq.s32.totalorder %s16, 0
      %p36 = por %p34, %p35
      %p37 = scmp.ne.s32.totalorder %s26, %s29
      %p38 = scmp.eq.s32.totalorder %s21, 1
      %p39 = por %p37, %p38
      %p40 = scmp.ne.s32.totalorder %s29, %s30
      %p41 = scmp.eq.s32.totalorder %s21, 0
      %p42 = por %p40, %p41
      %p43 = scmp.ne.s32.totalorder %s29, %s30
      %p44 = scmp.eq.s32.totalorder %s22, 1
      %p45 = por %p43, %p44
      %p47 = scmp.ne.s32.totalorder %s30, %s46
      %p48 = scmp.eq.s32.totalorder %s22, 0
      %p49 = por %p47, %p48
      %s51 = sadd.s32 %s50, 1
      %p54 = scmp.eq.s32.totalorder %s16, 1
      %p55 = scmp.ne.s32.totalorder %s50, %s52
      %p56 = scmp.eq.s32.totalorder %s16, 0
      %p57 = por %p55, %p56
      %p58 = scmp.ne.s32.totalorder %s50, %s52
      %p59 = scmp.eq.s32.totalorder %s21, 1
      %p60 = por %p58, %p59
      %p61 = scmp.ne.s32.totalorder %s52, %s53
      %p62 = scmp.eq.s32.totalorder %s21, 0
      %p63 = por %p61, %p62
      %p64 = scmp.ne.s32.totalorder %s52, %s53
      %p65 = scmp.eq.s32.totalorder %s22, 1
      %p66 = por %p64, %p65
      %p68 = scmp.ne.s32.totalorder %s53, %s67
      %p69 = scmp.eq.s32.totalorder %s22, 0
      %p70 = por %p68, %p69
      %s72 = sadd.s32 %s71, 1
      %p75 = scmp.eq.s32.totalorder %s16, 1
      %p76 = scmp.ne.s32.totalorder %s71, %s73
      %p77 = scmp.eq.s32.totalorder %s16, 0
      %p78 = por %p76, %p77
      %p79 = scmp.ne.s32.totalorder %s71, %s73
      %p80 = scmp.eq.s32.totalorder %s21, 1
      %p81 = por %p79, %p80
      %p82 = scmp.ne.s32.totalorder %s73, %s74
      %p83 = scmp.eq.s32.totalorder %s21, 0
      %p84 = por %p82, %p83
      %p85 = scmp.ne.s32.totalorder %s73, %s74
      %p86 = scmp.eq.s32.totalorder %s22, 1
      %p87 = por %p85, %p86
      %p89 = scmp.ne.s32.totalorder %s74, %s88
      %p90 = scmp.eq.s32.totalorder %s22, 0
      %p91 = por %p89, %p90
      %s92 = ssub.s32 %s16, %s23
      %p93 = scmp.eq.s32.totalorder %s92, 0
      %s95 = sadd.s32 %s94, 1
      %s96 = scalar_select %p93, %s94, %s95
      %p99 = pneg %p93
      %p100 = scmp.eq.s32.totalorder %s16, 1
      %p101 = por %p99, %p100
      %p102 = scmp.ne.s32.totalorder %s94, %s97
      %p103 = scmp.eq.s32.totalorder %s16, 0
      %p104 = por %p102, %p103
      %p105 = scmp.ne.s32.totalorder %s94, %s97
      %p106 = scmp.eq.s32.totalorder %s21, 1
      %p107 = por %p105, %p106
      %p108 = scmp.ne.s32.totalorder %s97, %s98
      %p109 = scmp.eq.s32.totalorder %s21, 0
      %p110 = por %p108, %p109
      %p111 = scmp.ne.s32.totalorder %s97, %s98
      %p112 = scmp.eq.s32.totalorder %s22, 1
      %p113 = por %p111, %p112
      %p115 = scmp.ne.s32.totalorder %s98, %s114
      %p116 = scmp.eq.s32.totalorder %s22, 0
      %p117 = por %p115, %p116
      %p118 = scmp.le.s32.totalorder 1, %s16
      %p119 = scmp.lt.s32.totalorder %s16, 3
      %p120 = pnand %p118, %p119
      %p121 = pneg %p120
      // Predicated region
      $region9: #{tpu_custom_call.1} parent=5 // pred_check
        _
      $region10: #{tpu_custom_call.1} parent=5 // pred_check_branch
        %123 = sbr.rel (%p120) target = $region12
      $region11: #{tpu_custom_call.1} parent=5 // pred_region
        %s124 = ssub.s32 %s16, 1
        // Predicated region
        $region13: #{tpu_custom_call.1} parent=11 // pred_check
          %p125 = pneg %p63
        $region14: #{tpu_custom_call.1} parent=11 // pred_check_branch
          %127 = sbr.rel (%p125) target = $region16
        $region15: #{tpu_custom_call.1} parent=11 // pred_region
          %s129 = ssub.s32 512, 512
          %130 = vsyncadd [#allocation6], %s129
          %s131 = sshll.u32 [#allocation5], 4
          %s132 = int_to_ptr.vmem [resolvable:$true] %s131
          %137 = dma.hbm_to_vmem [thread:$0]  %s1, 512, %s132, [#allocation6], 128, 128, 8
        $region16: #{tpu_custom_call.1} parent=11 // pred_fallthru
          _
        // Predicated region
        $region17: #{tpu_custom_call.1} parent=11 // pred_check
          %p138 = pneg %p84
        $region18: #{tpu_custom_call.1} parent=11 // pred_check_branch
          %140 = sbr.rel (%p138) target = $region20
        $region19: #{tpu_custom_call.1} parent=11 // pred_region
          _
        $region20: #{tpu_custom_call.1} parent=11 // pred_fallthru
          _
      $region12: #{tpu_custom_call.1} parent=5 // pred_fallthru
        _
      %p141 = scmp.lt.s32.totalorder %s16, 2
      // Predicated region
      $region21: #{tpu_custom_call.1} parent=5 // pred_check
        %p142 = pneg %p141
      $region22: #{tpu_custom_call.1} parent=5 // pred_check_branch
        %144 = sbr.rel (%p142) target = $region24
      $region23: #{tpu_custom_call.1} parent=5 // pred_region
        // Predicated region
        $region25: #{tpu_custom_call.1} parent=23 // pred_check
          %p145 = pneg %p36
        $region26: #{tpu_custom_call.1} parent=23 // pred_check_branch
          %147 = sbr.rel (%p145) target = $region28
        $region27: #{tpu_custom_call.1} parent=23 // pred_region
          %s148 = sand.u32 %s26, 1
          %s149 = scalar_lea.sflag [#allocation3], %s148
          %s150 = sand.u32 %s26, 1
          %s151 = smul.addr %s150, 16
          %s152 = scalar_lea.vmem [#allocation2], %s151
          %s153 = smul.u32 2, %s16
          %s155 = ssub.s32 256, 256
          %156 = vsyncadd %s149, %s155
          %s157 = smul.addr %s153, 128
          %s158 = scalar_lea.hbm %s0, %s157
          %s159 = sshll.u32 %s152, 4
          %s160 = int_to_ptr.vmem [resolvable:$true] %s159
          %165 = dma.hbm_to_vmem [thread:$0]  %s158, 256, %s160, %s149, 128, 128, 8
        $region28: #{tpu_custom_call.1} parent=23 // pred_fallthru
          _
      $region24: #{tpu_custom_call.1} parent=5 // pred_fallthru
        _
      %p166 = scmp.le.s32.totalorder 1, %s16
      %p167 = scmp.lt.s32.totalorder %s16, 3
      %p168 = pnand %p166, %p167
      %p169 = pneg %p168
      // Predicated region
      $region29: #{tpu_custom_call.1} parent=5 // pred_check
        _
      $region30: #{tpu_custom_call.1} parent=5 // pred_check_branch
        %171 = sbr.rel (%p168) target = $region32
      $region31: #{tpu_custom_call.1} parent=5 // pred_region
        %s172 = ssub.s32 %s16, 1
        %s173 = sand.u32 %s29, 1
        %s174 = scalar_lea.sflag [#allocation3], %s173
        %s175 = sand.u32 %s29, 1
        %s176 = smul.addr %s175, 16
        %s177 = scalar_lea.vmem [#allocation2], %s176
        // Predicated region
        $region33: #{tpu_custom_call.1} parent=31 // pred_check
          %p178 = pneg %p42
        $region34: #{tpu_custom_call.1} parent=31 // pred_check_branch
          %180 = sbr.rel (%p178) target = $region36
        $region35: #{tpu_custom_call.1} parent=31 // pred_region
          %181 = dma.done %s174, 256
        $region36: #{tpu_custom_call.1} parent=31 // pred_fallthru
          _
        // Predicated region
        $region37: #{tpu_custom_call.1} parent=31 // pred_check
          %p182 = pneg %p63
        $region38: #{tpu_custom_call.1} parent=31 // pred_check_branch
          %184 = sbr.rel (%p182) target = $region40
        $region39: #{tpu_custom_call.1} parent=31 // pred_region
          %185 = dma.done [#allocation6], 512
        $region40: #{tpu_custom_call.1} parent=31 // pred_fallthru
          _
        %s186 = sand.u32 %s29, 1
        %s187 = scalar_lea.sflag [#allocation3], %s186
        %s188 = sand.u32 %s29, 1
        %s189 = smul.addr %s188, 16
        %s190 = scalar_lea.vmem [#allocation2], %s189
        %p191 = pneg %p42
        %p192 = pneg %p39
        %p193 = pneg %p63
        %p194 = pneg %p60
        %p195 = pneg %p84
        %p196 = pneg %p81
        %p197 = pneg %p110
        %p198 = pneg %p107
        %s199 = sand.u32 %s97, 1
        %s200 = scalar_lea.sflag [#allocation4], %s199
        %s201 = sand.u32 %s97, 1
        %s202 = smul.addr %s201, 16
        %s203 = scalar_lea.vmem [#allocation7], %s202
        %s204 = smul.u32 2, %s21
        %s205 = smul.u32 2, %s21
        %v206 = vld [vmem:[%s177] sm:$0xff]
        %v207 = vld [vmem:[%s177 + $0x8] sm:$0xff]
        %v208 = vld [vmem:[#allocation5] sm:$0xff]
        %v209 = vld [vmem:[#allocation5 + $0x8] sm:$0xff]
        %v210 = vld [vmem:[#allocation5 + $0x10] sm:$0xff]
        %v211 = vld [vmem:[#allocation5 + $0x18] sm:$0xff]
        %v212 = vld [vmem:[%s2] sm:$0x1]
        %v214 = vlaneseq
        %v215 = vshrl.u32 %v214, 7
        %v216 = vsub.s32 0, %v215
        %v217 = vrot.slane %v212, %v216
        %vm219 = vcmask 261120
        %v221 = vsel %vm219, %v206, 0
        %v224 = vsel %vm219, %v207, 0
        %226 = vmatprep.subr.mxu0 0.0
        %227 = vmatpush1.msra.mxu0 %v208
        %228 = vmatprep.subr.mxu0 0.0
        %229 = vmatpush1.msra.mxu0 %v209
        %230 = vmatprep.subr.mxu0 0.0
        %231 = vmatpush1.msra.mxu0 %v210
        %232 = vmatprep.subr.mxu0 0.0
        %233 = vmatpush1.msra.mxu0 %v211
        %234 = vmatprep.subr.mxu0 0.0
        %235 = vmatpush1.msra.mxu0 0.0
        %236 = vmatprep.subr.mxu0 0.0
        %237 = vmatpush1.msra.mxu0 0.0
        %238 = vmatprep.subr.mxu0 0.0
        %239 = vmatpush1.msra.mxu0 0.0
        %240 = vmatprep.subr.mxu0 0.0
        %241 = vmatpush1.msra.mxu0 0.0
        %242 = vmatprep.subr.mxu0 0.0
        %243 = vmatpush1.msra.mxu0 0.0
        %244 = vmatprep.subr.mxu0 0.0
        %245 = vmatpush1.msra.mxu0 0.0
        %246 = vmatprep.subr.mxu0 0.0
        %247 = vmatpush1.msra.mxu0 0.0
        %248 = vmatprep.subr.mxu0 0.0
        %249 = vmatpush1.msra.mxu0 0.0
        %250 = vmatprep.subr.mxu0 0.0
        %251 = vmatpush1.msra.mxu0 0.0
        %252 = vmatprep.subr.mxu0 0.0
        %253 = vmatpush1.msra.mxu0 0.0
        %254 = vmatprep.subr.mxu0 0.0
        %255 = vmatpush1.msra.mxu0 0.0
        %256 = vmatprep.subr.mxu0 0.0
        %257 = vmatpush1.msra.mxu0 0.0
        %258 = vmatprep.subr.mxu0 0.0
        %259 = vmatpush1.msra.mxu0 0.0
        %260 = vmatprep.subr.mxu0 0.0
        %261 = vmatpush1.msra.mxu0 0.0
        %262 = vmatprep.subr.mxu0 0.0
        %263 = vmatpush1.msra.mxu0 0.0
        %264 = vmatprep.subr.mxu0 0.0
        %265 = vmatpush1.msra.mxu0 0.0
        %266 = vmatprep.subr.mxu0 0.0
        %267 = vmatpush1.msra.mxu0 0.0
        %268 = vmatprep.subr.mxu0 0.0
        %269 = vmatpush1.msra.mxu0 0.0
        %270 = vmatprep.subr.mxu0 0.0
        %271 = vmatpush1.msra.mxu0 0.0
        %272 = vmatprep.subr.mxu0 0.0
        %273 = vmatpush1.msra.mxu0 0.0
        %274 = vmatprep.subr.mxu0 0.0
        %275 = vmatpush1.msra.mxu0 0.0
        %276 = vmatprep.subr.mxu0 0.0
        %277 = vmatpush1.msra.mxu0 0.0
        %278 = vmatprep.subr.mxu0 0.0
        %279 = vmatpush1.msra.mxu0 0.0
        %280 = vmatprep.subr.mxu0 0.0
        %281 = vmatpush1.msra.mxu0 0.0
        %282 = vmatprep.subr.mxu0 0.0
        %283 = vmatpush1.msra.mxu0 0.0
        %284 = vmatprep.subr.mxu0 0.0
        %285 = vmatpush1.msra.mxu0 0.0
        %286 = vmatprep.subr.mxu0 0.0
        %287 = vmatpush1.msra.mxu0 0.0
        %288 = vmatprep.subr.mxu0 0.0
        %289 = vmatpush1.msra.mxu0 0.0
        %290 = vmatprep.mubr.f32.mxu0 0.0
        %291 = vmatmul.mubr.f32.gmra.mrb[0].mxu0 %v221
        %v292 = vpop.f32.mrb[0].mxu0
        %v293 = vadd.f32 %v217, %v292
        %v294 = vpop.f32.mrb[0].mxu0
        %295 = vmatprep.mubr.f32.mxu0 0.0
        %296 = vmatmul.mubr.f32.gmra.mrb[0].mxu0 %v224
        %v297 = vpop.f32.mrb[0].mxu0
        %v298 = vadd.f32 %v217, %v297
        %v299 = vpop.f32.mrb[0].mxu0
        %300 = vdwg.mxu0
        %vm301 = vcmp.gt.f32.partialorder %v293, 0.0
        %vm302 = vcmp.gt.f32.partialorder %v298, 0.0
        %v303 = vmin.f32 %v293, 0.0
        %v304 = vmin.f32 %v298, 0.0
        %v305 = vmul.f32 %v303, 1.442695
        %v306 = vpow.pop %v305
        %v307 = vmul.f32 %v304, 1.442695
        %v308 = vpow.pop %v307
        %v309 = vsub.f32 %v306, 1.0
        %v310 = vsub.f32 %v308, 1.0
        %v311 = vsel %vm301, %v293, %v309
        %v312 = vsel %vm302, %v298, %v310
        %313 = vst [vmem:[%s203] sm:$0xff] %v311
        %314 = vst [vmem:[%s203 + $0x8] sm:$0xff] %v312
        %s315 = sand.u32 %s97, 1
        %s316 = scalar_lea.sflag [#allocation4], %s315
        %s317 = sand.u32 %s97, 1
        %s318 = smul.addr %s317, 16
        %s319 = scalar_lea.vmem [#allocation7], %s318
        // Predicated region
        $region41: #{tpu_custom_call.1} parent=31 // pred_check
          %p320 = pneg %p107
        $region42: #{tpu_custom_call.1} parent=31 // pred_check_branch
          %322 = sbr.rel (%p320) target = $region44
        $region43: #{tpu_custom_call.1} parent=31 // pred_region
          %s323 = smul.u32 2, %s21
          %s325 = ssub.s32 256, 256
          %326 = vsyncadd %s316, %s325
          %s327 = smul.addr %s323, 128
          %s328 = scalar_lea.hbm %s3, %s327
          %s329 = sshll.u32 %s319, 4
          %s330 = int_to_ptr.vmem [resolvable:$true] %s329
          %335 = dma.vmem_to_hbm [thread:$0]  %s330, 256, %s328, %s316, 128, 128, 8
        $region44: #{tpu_custom_call.1} parent=31 // pred_fallthru
          _
      $region32: #{tpu_custom_call.1} parent=5 // pred_fallthru
        _
      %p336 = scmp.le.s32.totalorder 2, %s16
      // Predicated region
      $region45: #{tpu_custom_call.1} parent=5 // pred_check
        %p337 = pneg %p336
      $region46: #{tpu_custom_call.1} parent=5 // pred_check_branch
        %339 = sbr.rel (%p337) target = $region48
      $region47: #{tpu_custom_call.1} parent=5 // pred_region
        %s340 = ssub.s32 %s16, 2
        // Predicated region
        $region49: #{tpu_custom_call.1} parent=47 // pred_check
          %p341 = pneg %p113
        $region50: #{tpu_custom_call.1} parent=47 // pred_check_branch
          %343 = sbr.rel (%p341) target = $region52
        $region51: #{tpu_custom_call.1} parent=47 // pred_region
          %s344 = sand.u32 %s98, 1
          %s345 = scalar_lea.sflag [#allocation4], %s344
          %s346 = sand.u32 %s98, 1
          %s347 = smul.addr %s346, 16
          %s348 = scalar_lea.vmem [#allocation7], %s347
          %349 = dma.done %s345, 256
        $region52: #{tpu_custom_call.1} parent=47 // pred_fallthru
          _
      $region48: #{tpu_custom_call.1} parent=5 // pred_fallthru
        _
    $region6: #{tpu_custom_call.1} parent=1 // loop_footer
      %s20 = sadd.s32 1, %s16
    $region7: #{tpu_custom_call.1} parent=1 // loop_footer_branch
      %15 = sbr.rel target = $region3
    $region8: #{tpu_custom_call.1} parent=1 // loop_exit
      _
    %350 = vsyncpa [#allocation3], 1
    %s351 = scalar_lea.sflag [#allocation3], 1
    %352 = vsyncpa %s351, 1
    %353 = vsyncpa [#allocation6], 1
    %354 = vsyncpa [#allocation4], 1
    %s355 = scalar_lea.sflag [#allocation4], 1
    %356 = vsyncpa %s355, 1

</llo_original>
